<compile_context>
chip_gen: v5e
topology: v5e:2x2
jax: 0.10.0
libtpu: 0.0.40
codegen_flags: <defaults>
</compile_context>

<pallas_src>
import functools

import jax
import jax.numpy as jnp
from jax import lax
from jax.experimental import pallas as pl
from jax.experimental.pallas import tpu as pltpu


def _round_up(x, m):
    return (x + m - 1) // m * m


def _a_model_kernel(x1_ref, a_ref, x2_ref, o_ref):
    # B[n, i] = sum_k x2[n, k] * A[i, k]   == (A @ x2.T).T, no transpose materialized.
    # Tiny (N_pad x d_out x d_in) matmul; negligible per-tile recompute cost and it
    # keeps the "parallel" M axis safe (no cross-iteration scratch dependency).
    b = lax.dot_general(
        x2_ref[...],
        a_ref[...],
        dimension_numbers=(((1,), (1,)), ((), ())),
        preferred_element_type=jnp.float32,
    )
    # out[m, n] = sum_i x1[m, i] * B[n, i]  == (x1 @ A @ x2.T) on this M-tile.
    o = lax.dot_general(
        x1_ref[...],
        b,
        dimension_numbers=(((1,), (1,)), ((), ())),
        preferred_element_type=jnp.float32,
    )
    o_ref[...] = o.astype(o_ref.dtype)


@functools.partial(jax.jit, static_argnames=("tm",))
def a_model_forward(x1, A, x2, *, tm=256):
    M, d_in = x1.shape
    N, d_out = x2.shape
    assert A.shape == (d_in, d_out)
    out_dtype = x1.dtype

    # Lane-dense output: pad N up to a multiple of 128 (full-lane stores).
    n_pad = _round_up(max(N, 1), 128)
    # M tile: multiple of 8 (sublane), capped at `tm`; pad M so the grid divides evenly.
    m_tile = min(tm, _round_up(max(M, 1), 8))
    m_pad = _round_up(max(M, 1), m_tile)

    x1_p = x1 if m_pad == M else jnp.pad(x1, ((0, m_pad - M), (0, 0)))
    x2_p = x2 if n_pad == N else jnp.pad(x2, ((0, n_pad - N), (0, 0)))

    grid = (m_pad // m_tile,)

    flops = 2 * n_pad * d_out * d_in * grid[0] + 2 * m_pad * d_in * n_pad
    bytes_accessed = (
        x1_p.size * x1_p.dtype.itemsize
        + A.size * A.dtype.itemsize
        + x2_p.size * x2_p.dtype.itemsize
        + m_pad * n_pad * jnp.dtype(out_dtype).itemsize
    )

    out_p = pl.pallas_call(
        _a_model_kernel,
        out_shape=jax.ShapeDtypeStruct((m_pad, n_pad), out_dtype),
        grid_spec=pl.GridSpec(
            grid=grid,
            in_specs=[
                pl.BlockSpec((m_tile, d_in), lambda i: (i, 0)),  # x1: tiled over M
                pl.BlockSpec((d_in, d_out), lambda i: (0, 0)),   # A: resident
                pl.BlockSpec((n_pad, d_out), lambda i: (0, 0)),  # x2: resident
            ],
            out_specs=pl.BlockSpec((m_tile, n_pad), lambda i: (i, 0)),
        ),
        compiler_params=pltpu.CompilerParams(
            dimension_semantics=("parallel",),
            vmem_limit_bytes=32 * 1024 * 1024,  # safe on v5e/v6e/v7x; tiles are tiny
        ),
        cost_estimate=pl.CostEstimate(
            flops=int(flops), transcendentals=0, bytes_accessed=int(bytes_accessed)
        ),
    )(x1_p, A, x2_p)

    return out_p[:M, :N]


if __name__ == "__main__":
    # Small shapes consistent with the module: d_in=32, d_out=16, batches of 8.
    M, d_in = 8, 32
    N, d_out = 8, 16

    key = jax.random.PRNGKey(0)
    k1, k2 = jax.random.split(key)
    x1 = jax.random.normal(k1, (M, d_in), dtype=jnp.float32)
    x2 = jax.random.normal(k2, (N, d_out), dtype=jnp.float32)

    # Deterministic parameter init, matching torch.full((d_in, d_out), 0.001).
    A = jnp.full((d_in, d_out), 0.001, dtype=jnp.float32)

    out = a_model_forward(x1, A, x2)
    jax.block_until_ready(out)

    # Reference check (pure JAX).
    ref = x1 @ A @ x2.T
    assert out.shape == (M, N)
    assert jnp.allclose(out, ref, atol=1e-5, rtol=1e-5), "mismatch vs reference"

    print("KERNEL_OK")
</pallas_src>

<mosaic_0001>
module attributes {stable_mosaic.version = 11 : i64} {
  func.func @_a_model_kernel(%arg0: i32, %arg1: memref<8x32xf32, #tpu.memory_space<vmem>>, %arg2: memref<32x16xf32, #tpu.memory_space<vmem>>, %arg3: memref<128x16xf32, #tpu.memory_space<vmem>>, %arg4: memref<8x128xf32, #tpu.memory_space<vmem>>) attributes {dimension_semantics = [#tpu.dimension_semantics<parallel>], iteration_bounds = array<i64: 1>, scalar_prefetch = 0 : i64, scratch_operands = 0 : i64, tpu.core_type = #tpu.core_type<tc>, window_params = [{transform_indices = @transform_0, window_bounds = array<i64: 8, 32>}, {pipeline_mode = #tpu.pipeline_mode<synchronous>, transform_indices = @transform_1, window_bounds = array<i64: 32, 16>}, {pipeline_mode = #tpu.pipeline_mode<synchronous>, transform_indices = @transform_2, window_bounds = array<i64: 128, 16>}, {transform_indices = @transform_3, window_bounds = array<i64: 8, 128>}]} {
    %c0 = arith.constant 0 : index
    %c0_0 = arith.constant 0 : index
    %0 = vector.load %arg3[%c0, %c0_0] : memref<128x16xf32, #tpu.memory_space<vmem>>, vector<128x16xf32>
    %c0_1 = arith.constant 0 : index
    %c0_2 = arith.constant 0 : index
    %1 = vector.load %arg2[%c0_1, %c0_2] : memref<32x16xf32, #tpu.memory_space<vmem>>, vector<32x16xf32>
    %cst = arith.constant dense<0.000000e+00> : vector<128x32xf32>
    %2 = tpu.matmul %0, %1, %cst {dimension_numbers = #tpu.dot_dimension_numbers<[1], [1], [0], [0], [0, 0, 1, 0], [], []>} : vector<128x16xf32>, vector<32x16xf32>, vector<128x32xf32> -> vector<128x32xf32>
    %c0_3 = arith.constant 0 : index
    %c0_4 = arith.constant 0 : index
    %3 = vector.load %arg1[%c0_3, %c0_4] : memref<8x32xf32, #tpu.memory_space<vmem>>, vector<8x32xf32>
    %cst_5 = arith.constant dense<0.000000e+00> : vector<8x128xf32>
    %4 = tpu.matmul %3, %2, %cst_5 {dimension_numbers = #tpu.dot_dimension_numbers<[1], [1], [0], [0], [0, 0, 1, 0], [], []>} : vector<8x32xf32>, vector<128x32xf32>, vector<8x128xf32> -> vector<8x128xf32>
    %c0_6 = arith.constant 0 : index
    %c0_7 = arith.constant 0 : index
    %5 = vector.load %arg4[%c0_6, %c0_7] : memref<8x128xf32, #tpu.memory_space<vmem>>, vector<8x128xf32>
    tpu.vector_store %arg4[%c0_6, %c0_7], %4 {strides = array<i32>} : memref<8x128xf32, #tpu.memory_space<vmem>>, vector<8x128xf32>,
    return
  }
  func.func @transform_0(%arg0: i32) -> (i32, i32) {
    %c0_i32 = arith.constant 0 : i32
    %c0_i32_0 = arith.constant 0 : i32
    return %arg0, %c0_i32 : i32, i32
  }
  func.func @transform_1(%arg0: i32) -> (i32, i32) {
    %c0_i32 = arith.constant 0 : i32
    %c0_i32_0 = arith.constant 0 : i32
    %c0_i32_1 = arith.constant 0 : i32
    return %c0_i32, %c0_i32_0 : i32, i32
  }
  func.func @transform_2(%arg0: i32) -> (i32, i32) {
    %c0_i32 = arith.constant 0 : i32
    %c0_i32_0 = arith.constant 0 : i32
    %c0_i32_1 = arith.constant 0 : i32
    return %c0_i32, %c0_i32_0 : i32, i32
  }
  func.func @transform_3(%arg0: i32) -> (i32, i32) {
    %c0_i32 = arith.constant 0 : i32
    %c0_i32_0 = arith.constant 0 : i32
    return %arg0, %c0_i32 : i32, i32
  }
}

</mosaic_0001>

<llo_original>
// kernel: a_model_forward.1
$region0: #{a_model_forward.1}
  #allocation0 [shape = 'u32[]', space=smem, size = 0x4, offset = 0x4, fixed_abs, tag = 'smem constant byte address 0x4 - core index']
  #allocation1 [shape = 'u32[72,128]{1,0:T(1,128)}', space=vmem, size = 0x9000, scoped, tag = 'internal scratch']
  %s0 = inlined_call_operand.vmem [shape: f32[8,32], index: 0, kind: input, shape index: {}]
  %s1 = inlined_call_operand.vmem [shape: f32[32,16], index: 1, kind: input, shape index: {}]
  %s2 = inlined_call_operand.vmem [shape: f32[128,16], index: 2, kind: input, shape index: {}]
  %s3 = inlined_call_operand.hbm [shape: f32[8,128], index: 3, kind: output, shape index: {}]
  %s4 = sld [smem:[#allocation0]]
  $region22: #{a_model_forward.1} parent=0
    _
  %s6 = ssub.s32 1, %s4
  %s7 = scalar_select 0, %s6, %s4
  $region1: #{a_model_forward.1} parent=0
    #allocation2 [shape = 'u8[4096]{0}', space=vmem, size = 0x1000, scoped, tag = 'output window, operand 0, single buffered']
    #allocation3 [shape = 's32[1]{0}', space=sflag, size = 0x4, scoped, tag = 'scoped memory for a_model_forward.1']
    %8 = vsyncpa [#allocation3], 0
    // Predicated region
    $region2: #{a_model_forward.1} parent=1 // pred_check
      _
    $region3: #{a_model_forward.1} parent=1 // pred_check_branch
      %10 = sbr.rel (0) target = $region5
    $region4: #{a_model_forward.1} parent=1 // pred_region
      _
    $region5: #{a_model_forward.1} parent=1 // pred_fallthru
      _
    // Predicated region
    $region6: #{a_model_forward.1} parent=1 // pred_check
      _
    $region7: #{a_model_forward.1} parent=1 // pred_check_branch
      %12 = sbr.rel (0) target = $region9
    $region8: #{a_model_forward.1} parent=1 // pred_region
      _
    $region9: #{a_model_forward.1} parent=1 // pred_fallthru
      _
    // Predicated region
    $region10: #{a_model_forward.1} parent=1 // pred_check
      _
    $region11: #{a_model_forward.1} parent=1 // pred_check_branch
      %14 = sbr.rel (0) target = $region13
    $region12: #{a_model_forward.1} parent=1 // pred_region
      _
    $region13: #{a_model_forward.1} parent=1 // pred_fallthru
      _
    %v15 = vld [vmem:[%s2] sm:$0xff]
    %v16 = vld [vmem:[%s2 + $0x8] sm:$0xff]
    %v17 = vld [vmem:[%s2 + $0x10] sm:$0xff]
    %v18 = vld [vmem:[%s2 + $0x18] sm:$0xff]
    %v19 = vld [vmem:[%s2 + $0x20] sm:$0xff]
    %v20 = vld [vmem:[%s2 + $0x28] sm:$0xff]
    %v21 = vld [vmem:[%s2 + $0x30] sm:$0xff]
    %v22 = vld [vmem:[%s2 + $0x38] sm:$0xff]
    %v23 = vld [vmem:[%s2 + $0x40] sm:$0xff]
    %v24 = vld [vmem:[%s2 + $0x48] sm:$0xff]
    %v25 = vld [vmem:[%s2 + $0x50] sm:$0xff]
    %v26 = vld [vmem:[%s2 + $0x58] sm:$0xff]
    %v27 = vld [vmem:[%s2 + $0x60] sm:$0xff]
    %v28 = vld [vmem:[%s2 + $0x68] sm:$0xff]
    %v29 = vld [vmem:[%s2 + $0x70] sm:$0xff]
    %v30 = vld [vmem:[%s2 + $0x78] sm:$0xff]
    %v31 = vld [vmem:[%s1] sm:$0xff]
    %v32 = vld [vmem:[%s1 + $0x8] sm:$0xff]
    %v33 = vld [vmem:[%s1 + $0x10] sm:$0xff]
    %v34 = vld [vmem:[%s1 + $0x18] sm:$0xff]
    %vm35 = vcmask 130048
    %v37 = vsel %vm35, %v15, 0
    %v40 = vsel %vm35, %v16, 0
    %v43 = vsel %vm35, %v17, 0
    %v46 = vsel %vm35, %v18, 0
    %v49 = vsel %vm35, %v19, 0
    %v52 = vsel %vm35, %v20, 0
    %v55 = vsel %vm35, %v21, 0
    %v58 = vsel %vm35, %v22, 0
    %v61 = vsel %vm35, %v23, 0
    %v64 = vsel %vm35, %v24, 0
    %v67 = vsel %vm35, %v25, 0
    %v70 = vsel %vm35, %v26, 0
    %v73 = vsel %vm35, %v27, 0
    %v76 = vsel %vm35, %v28, 0
    %v79 = vsel %vm35, %v29, 0
    %v82 = vsel %vm35, %v30, 0
    %v85 = vsel %vm35, %v31, 0
    %v88 = vsel %vm35, %v32, 0
    %v91 = vsel %vm35, %v33, 0
    %v94 = vsel %vm35, %v34, 0
    %96 = vmatpush.xpose.msra.mxu0 0.0
    %97 = vmatpush.xpose.msra.mxu0 0.0
    %98 = vmatpush.xpose.msra.mxu0 0.0
    %99 = vmatpush.xpose.msra.mxu0 0.0
    %100 = vmatpush.xpose.msra.mxu0 0.0
    %101 = vmatpush.xpose.msra.mxu0 0.0
    %102 = vmatpush.xpose.msra.mxu0 0.0
    %103 = vmatpush.xpose.msra.mxu0 0.0
    %104 = vmatpush.xpose.msra.mxu0 0.0
    %105 = vmatpush.xpose.msra.mxu0 0.0
    %106 = vmatpush.xpose.msra.mxu0 0.0
    %107 = vmatpush.xpose.msra.mxu0 0.0
    %108 = vmatpush.xpose.msra.mxu0 %v94
    %109 = vmatpush.xpose.msra.mxu0 %v91
    %110 = vmatpush.xpose.msra.mxu0 %v88
    %111 = vmatpush.xpose.msra.mxu0 %v85
    %112 = vmatmul.f32.gmra.mxu0 %v37
    %v113 = vpop.f32.mrf.mxu0
    %v114 = vadd.f32 0.0, %v113
    %115 = vmatmul.f32.gmra.mxu0 %v40
    %v116 = vpop.f32.mrf.mxu0
    %v117 = vadd.f32 0.0, %v116
    %118 = vmatmul.f32.gmra.mxu0 %v43
    %v119 = vpop.f32.mrf.mxu0
    %v120 = vadd.f32 0.0, %v119
    %121 = vmatmul.f32.gmra.mxu0 %v46
    %v122 = vpop.f32.mrf.mxu0
    %v123 = vadd.f32 0.0, %v122
    %124 = vmatmul.f32.gmra.mxu0 %v49
    %v125 = vpop.f32.mrf.mxu0
    %v126 = vadd.f32 0.0, %v125
    %127 = vmatmul.f32.gmra.mxu0 %v52
    %v128 = vpop.f32.mrf.mxu0
    %v129 = vadd.f32 0.0, %v128
    %130 = vmatmul.f32.gmra.mxu0 %v55
    %v131 = vpop.f32.mrf.mxu0
    %v132 = vadd.f32 0.0, %v131
    %133 = vmatmul.f32.gmra.mxu0 %v58
    %v134 = vpop.f32.mrf.mxu0
    %v135 = vadd.f32 0.0, %v134
    %136 = vmatmul.f32.gmra.mxu0 %v61
    %v137 = vpop.f32.mrf.mxu0
    %v138 = vadd.f32 0.0, %v137
    %139 = vmatmul.f32.gmra.mxu0 %v64
    %v140 = vpop.f32.mrf.mxu0
    %v141 = vadd.f32 0.0, %v140
    %142 = vmatmul.f32.gmra.mxu0 %v67
    %v143 = vpop.f32.mrf.mxu0
    %v144 = vadd.f32 0.0, %v143
    %145 = vmatmul.f32.gmra.mxu0 %v70
    %v146 = vpop.f32.mrf.mxu0
    %v147 = vadd.f32 0.0, %v146
    %148 = vmatmul.f32.gmra.mxu0 %v73
    %v149 = vpop.f32.mrf.mxu0
    %v150 = vadd.f32 0.0, %v149
    %151 = vmatmul.f32.gmra.mxu0 %v76
    %v152 = vpop.f32.mrf.mxu0
    %v153 = vadd.f32 0.0, %v152
    %154 = vmatmul.f32.gmra.mxu0 %v79
    %v155 = vpop.f32.mrf.mxu0
    %v156 = vadd.f32 0.0, %v155
    %157 = vmatmul.f32.gmra.mxu0 %v82
    %v158 = vpop.f32.mrf.mxu0
    %v159 = vadd.f32 0.0, %v158
    %160 = vdwg.mxu0
    %v161 = vld [vmem:[%s0] sm:$0xff]
    %vm162 = vcmask 261120
    %v164 = vsel %vm162, %v161, 0
    %v167 = vsel %vm162, %v114, 0
    %v170 = vsel %vm162, %v117, 0
    %v173 = vsel %vm162, %v120, 0
    %v176 = vsel %vm162, %v123, 0
    %v179 = vsel %vm162, %v126, 0
    %v182 = vsel %vm162, %v129, 0
    %v185 = vsel %vm162, %v132, 0
    %v188 = vsel %vm162, %v135, 0
    %v191 = vsel %vm162, %v138, 0
    %v194 = vsel %vm162, %v141, 0
    %v197 = vsel %vm162, %v144, 0
    %v200 = vsel %vm162, %v147, 0
    %v203 = vsel %vm162, %v150, 0
    %v206 = vsel %vm162, %v153, 0
    %v209 = vsel %vm162, %v156, 0
    %v212 = vsel %vm162, %v159, 0
    %214 = vmatpush.xpose.msra.mxu0 %v212
    %215 = vmatpush.xpose.msra.mxu0 %v209
    %216 = vmatpush.xpose.msra.mxu0 %v206
    %217 = vmatpush.xpose.msra.mxu0 %v203
    %218 = vmatpush.xpose.msra.mxu0 %v200
    %219 = vmatpush.xpose.msra.mxu0 %v197
    %220 = vmatpush.xpose.msra.mxu0 %v194
    %221 = vmatpush.xpose.msra.mxu0 %v191
    %222 = vmatpush.xpose.msra.mxu0 %v188
    %223 = vmatpush.xpose.msra.mxu0 %v185
    %224 = vmatpush.xpose.msra.mxu0 %v182
    %225 = vmatpush.xpose.msra.mxu0 %v179
    %226 = vmatpush.xpose.msra.mxu0 %v176
    %227 = vmatpush.xpose.msra.mxu0 %v173
    %228 = vmatpush.xpose.msra.mxu0 %v170
    %229 = vmatpush.xpose.msra.mxu0 %v167
    %230 = vmatmul.f32.gmra.mxu0 %v164
    %v231 = vpop.f32.mrf.mxu0
    %v232 = vadd.f32 0.0, %v231
    %233 = vdwg.mxu0
    %234 = vst [vmem:[#allocation2] sm:$0xff] %v232
    // Predicated region
    $region14: #{a_model_forward.1} parent=1 // pred_check
      _
    $region15: #{a_model_forward.1} parent=1 // pred_check_branch
      %236 = sbr.rel (0) target = $region17
    $region16: #{a_model_forward.1} parent=1 // pred_region
      %238 = vsyncadd [#allocation3], 0
      %s240 = sshll.u32 [#allocation2], 4
      %s241 = int_to_ptr.vmem [resolvable:$true] %s240
      %s242 = sshll.u32 %s3, 4
      %s243 = int_to_ptr.hbm [resolvable:$true] %s242
      %245 = dma.vmem_to_hbm [thread:$0]  %s241, 128, %s243, [#allocation3]
    $region17: #{a_model_forward.1} parent=1 // pred_fallthru
      _
    // Predicated region
    $region18: #{a_model_forward.1} parent=1 // pred_check
      _
    $region19: #{a_model_forward.1} parent=1 // pred_check_branch
      %247 = sbr.rel (0) target = $region21
    $region20: #{a_model_forward.1} parent=1 // pred_region
      %249 = dma.done [#allocation3], 128
    $region21: #{a_model_forward.1} parent=1 // pred_fallthru
      _
    %250 = vsyncpa [#allocation3], 1

</llo_original>
